<compile_context>
chip_gen: v7x
topology: tpu7x:2x2x1
jax: 0.10.0
libtpu: 0.0.40
codegen_flags: <defaults>
</compile_context>

<pallas_src>
from functools import partial

import jax
import jax.numpy as jnp
from jax import lax
from jax.experimental import pallas as pl
from jax.experimental.pallas import tpu as pltpu


def _round_up(x, m):
    return ((x + m - 1) // m) * m


def embed_kernel(props_ref, ids_ref, emb_ref, wpc_ref, b_ref, out_ref, *,
                 rows_per_wide, vocab):
    """One grid step processes `tile_rows` wide rows (= tile_rows*R real rows).

    props_ref : (tile_rows, R*D_in) f32   -- R packed property rows
    ids_ref   : (tile_rows, R*2)    i32   -- R packed id pairs
    emb_ref   : (R*V, R*K)          f32   -- block-diag folded embedding table
    wpc_ref   : (R*D_in, R*K)       f32   -- block-diag folded property weights
    b_ref     : (1, R*K)            f32   -- tiled fused bias
    out_ref   : (tile_rows, R*K)    f32   -- lane-dense output block
    """
    tile_rows = ids_ref.shape[0]
    rv = emb_ref.shape[0]                       # R * V

    # Embedding lookup as one-hot @ table (MXU).  V is small
    # (len(ATOM_NEIGHBOR_IDS)+1), so the O(tile_rows * R*V) compare work is
    # cheap VPU filler under the matmuls; for a large vocab this should switch
    # to a gather via scalar-prefetched ids instead.
    ids = ids_ref[...]                          # (tile_rows, 2R), read once
    col = lax.broadcasted_iota(jnp.int32, (tile_rows, rv), 1)
    onehot = jnp.zeros((tile_rows, rv), jnp.float32)
    for j in range(2 * rows_per_wide):
        # column j holds id j%2 of packed row group j//2 -> offset into its
        # own V-wide block of the block-diagonal table.
        idx = ids[:, j:j + 1] + (j // 2) * vocab        # (tile_rows, 1)
        onehot = onehot + (idx == col).astype(jnp.float32)

    out = jnp.dot(onehot, emb_ref[...], preferred_element_type=jnp.float32)
    out = out + jnp.dot(props_ref[...], wpc_ref[...],
                        preferred_element_type=jnp.float32)
    out_ref[...] = (out + b_ref[...]).astype(out_ref.dtype)


def embed_forward(node_props, atom_ids, emb_table, wp, bp, wc, bc, *,
                  tile_n=512):
    """node_props: [N, D_in] f32, atom_ids: [N, 2] int32.
    wp: [K, D_in], bp: [K], wc: [K, 2K], bc: [K] (PyTorch nn.Linear layout)."""
    N, d_in = node_props.shape
    V, K = emb_table.shape

    # --- fold the compress layer into the two input linears (exact algebra) --
    wc_t = wc.T                                   # (2K, K)
    emb_folded = emb_table @ wc_t[:K]             # (V, K)
    wpc = wp.T @ wc_t[K:]                         # (D_in, K)
    b_fused = (bp @ wc_t[K:] + bc).reshape(1, K)  # (1, K)

    # --- row packing: R rows per wide row so the output block is R*K lanes ---
    R = max(1, min(8, 128 // K)) if K < 128 else 1
    align = 8 * R                                  # wide rows must be 8-aligned
    tile = min(_round_up(tile_n, align), _round_up(N, align))
    Np = _round_up(N, tile)

    if Np != N:
        node_props = jnp.pad(node_props, ((0, Np - N), (0, 0)))
        atom_ids = jnp.pad(atom_ids, ((0, Np - N), (0, 0)))

    props_wide = node_props.reshape(Np // R, R * d_in)     # pure layout reshape
    ids_wide = atom_ids.reshape(Np // R, R * 2)

    eye_r = jnp.eye(R, dtype=jnp.float32)
    emb_block = jnp.kron(eye_r, emb_folded)        # (R*V,    R*K) block-diag
    wpc_block = jnp.kron(eye_r, wpc)               # (R*D_in, R*K) block-diag
    b_wide = jnp.tile(b_fused, (1, R))             # (1, R*K)

    tile_rows = tile // R
    grid = (Np // tile,)

    out_wide = pl.pallas_call(
        partial(embed_kernel, rows_per_wide=R, vocab=V),
        out_shape=jax.ShapeDtypeStruct((Np // R, R * K), jnp.float32),
        grid_spec=pltpu.PrefetchScalarGridSpec(
            num_scalar_prefetch=0,
            grid=grid,
            in_specs=[
                pl.BlockSpec((tile_rows, R * d_in), lambda i: (i, 0)),  # props
                pl.BlockSpec((tile_rows, R * 2), lambda i: (i, 0)),     # ids
                pl.BlockSpec((R * V, R * K), lambda i: (0, 0)),         # emb
                pl.BlockSpec((R * d_in, R * K), lambda i: (0, 0)),      # wpc
                pl.BlockSpec((1, R * K), lambda i: (0, 0)),             # bias
            ],
            out_specs=pl.BlockSpec((tile_rows, R * K), lambda i: (i, 0)),
        ),
        compiler_params=pltpu.CompilerParams(
            dimension_semantics=("parallel",)),
    )(props_wide, ids_wide, emb_block, wpc_block, b_wide)

    # Unpack wide rows back to (N, K) and drop the padded rows.
    return out_wide.reshape(Np, K)[:N]


def embed_reference(node_props, atom_ids, emb_table, wp, bp, wc, bc):
    atom_out = emb_table[atom_ids[:, 0]] + emb_table[atom_ids[:, 1]]
    prop_out = node_props @ wp.T + bp
    concat = jnp.concatenate([atom_out, prop_out], axis=1)
    return concat @ wc.T + bc


if __name__ == "__main__":
    # Small, module-consistent shapes (N intentionally not a multiple of the
    # default tile to exercise the padding path).
    N = 22            # number of nodes
    D_IN = 16         # input_dim (number of node properties)
    K = 32            # kernel_dim
    V = 32            # len(ATOM_NEIGHBOR_IDS) + 1 (synthetic vocab size)

    key = jax.random.PRNGKey(0)
    k1, k2, k3, k4, k5, k6, k7 = jax.random.split(key, 7)

    # Deterministic synthetic parameters (shapes follow the PyTorch __init__).
    emb_table = jax.random.normal(k1, (V, K), dtype=jnp.float32)        # nn.Embedding.weight
    wp = 0.1 * jax.random.normal(k2, (K, D_IN), dtype=jnp.float32)      # prop_embedding.weight
    bp = 0.1 * jax.random.normal(k3, (K,), dtype=jnp.float32)           # prop_embedding.bias
    wc = 0.1 * jax.random.normal(k4, (K, 2 * K), dtype=jnp.float32)     # compress.weight
    bc = 0.1 * jax.random.normal(k5, (K,), dtype=jnp.float32)           # compress.bias

    # Inputs.
    node_props = jax.random.normal(k6, (N, D_IN), dtype=jnp.float32)
    atom_ids = jax.random.randint(k7, (N, 2), 0, V, dtype=jnp.int32)

    out = embed_forward(node_props, atom_ids, emb_table, wp, bp, wc, bc)
    out = jax.block_until_ready(out)

    ref = embed_reference(node_props, atom_ids, emb_table, wp, bp, wc, bc)
    assert out.shape == (N, K)
    assert jnp.allclose(out, ref, atol=1e-3, rtol=1e-3), "mismatch vs reference"

    print("KERNEL_OK")
</pallas_src>

<mosaic_0001>
module attributes {stable_mosaic.version = 11 : i64} {
  func.func @embed_kernel(%arg0: i32, %arg1: memref<8x64xf32, #tpu.memory_space<vmem>>, %arg2: memref<8x8xi32, #tpu.memory_space<vmem>>, %arg3: memref<128x128xf32, #tpu.memory_space<vmem>>, %arg4: memref<64x128xf32, #tpu.memory_space<vmem>>, %arg5: memref<1x128xf32, #tpu.memory_space<vmem>>, %arg6: memref<8x128xf32, #tpu.memory_space<vmem>>) attributes {dimension_semantics = [#tpu.dimension_semantics<parallel>], iteration_bounds = array<i64: 1>, scalar_prefetch = 0 : i64, scratch_operands = 0 : i64, tpu.core_type = #tpu.core_type<tc>, window_params = [{transform_indices = @transform_0, window_bounds = array<i64: 8, 64>}, {transform_indices = @transform_1, window_bounds = array<i64: 8, 8>}, {pipeline_mode = #tpu.pipeline_mode<synchronous>, transform_indices = @transform_2, window_bounds = array<i64: 128, 128>}, {pipeline_mode = #tpu.pipeline_mode<synchronous>, transform_indices = @transform_3, window_bounds = array<i64: 64, 128>}, {pipeline_mode = #tpu.pipeline_mode<synchronous>, transform_indices = @transform_4, window_bounds = array<i64: 1, 128>}, {transform_indices = @transform_5, window_bounds = array<i64: 8, 128>}]} {
    %c0 = arith.constant 0 : index
    %c0_0 = arith.constant 0 : index
    %0 = vector.load %arg2[%c0, %c0_0] : memref<8x8xi32, #tpu.memory_space<vmem>>, vector<8x8xi32>
    %1 = tpu.iota {dimensions = array<i32: 1>} : vector<8x128xi32>
    %cst = arith.constant 0.000000e+00 : f32
    %2 = vector.broadcast %cst : f32 to vector<8x128xf32>
    %3 = vector.extract_strided_slice %0 {offsets = [0, 0], sizes = [8, 1], strides = [1, 1]} : vector<8x8xi32> to vector<8x1xi32>
    %c0_i32 = arith.constant 0 : i32
    %4 = vector.broadcast %c0_i32 : i32 to vector<8x1xi32>
    %5 = arith.addi %3, %4 : vector<8x1xi32>
    %6 = vector.broadcast %5 : vector<8x1xi32> to vector<8x128xi32>
    %7 = arith.cmpi eq, %6, %1 : vector<8x128xi32>
    %8 = arith.extui %7 : vector<8x128xi1> to vector<8x128xi32>
    %9 = arith.sitofp %8 : vector<8x128xi32> to vector<8x128xf32>
    %10 = arith.addf %2, %9 : vector<8x128xf32>
    %11 = vector.extract_strided_slice %0 {offsets = [0, 1], sizes = [8, 1], strides = [1, 1]} : vector<8x8xi32> to vector<8x1xi32>
    %c0_i32_1 = arith.constant 0 : i32
    %12 = vector.broadcast %c0_i32_1 : i32 to vector<8x1xi32>
    %13 = arith.addi %11, %12 : vector<8x1xi32>
    %14 = vector.broadcast %13 : vector<8x1xi32> to vector<8x128xi32>
    %15 = arith.cmpi eq, %14, %1 : vector<8x128xi32>
    %16 = arith.extui %15 : vector<8x128xi1> to vector<8x128xi32>
    %17 = arith.sitofp %16 : vector<8x128xi32> to vector<8x128xf32>
    %18 = arith.addf %10, %17 : vector<8x128xf32>
    %19 = vector.extract_strided_slice %0 {offsets = [0, 2], sizes = [8, 1], strides = [1, 1]} : vector<8x8xi32> to vector<8x1xi32>
    %c32_i32 = arith.constant 32 : i32
    %20 = vector.broadcast %c32_i32 : i32 to vector<8x1xi32>
    %21 = arith.addi %19, %20 : vector<8x1xi32>
    %22 = vector.broadcast %21 : vector<8x1xi32> to vector<8x128xi32>
    %23 = arith.cmpi eq, %22, %1 : vector<8x128xi32>
    %24 = arith.extui %23 : vector<8x128xi1> to vector<8x128xi32>
    %25 = arith.sitofp %24 : vector<8x128xi32> to vector<8x128xf32>
    %26 = arith.addf %18, %25 : vector<8x128xf32>
    %27 = vector.extract_strided_slice %0 {offsets = [0, 3], sizes = [8, 1], strides = [1, 1]} : vector<8x8xi32> to vector<8x1xi32>
    %c32_i32_2 = arith.constant 32 : i32
    %28 = vector.broadcast %c32_i32_2 : i32 to vector<8x1xi32>
    %29 = arith.addi %27, %28 : vector<8x1xi32>
    %30 = vector.broadcast %29 : vector<8x1xi32> to vector<8x128xi32>
    %31 = arith.cmpi eq, %30, %1 : vector<8x128xi32>
    %32 = arith.extui %31 : vector<8x128xi1> to vector<8x128xi32>
    %33 = arith.sitofp %32 : vector<8x128xi32> to vector<8x128xf32>
    %34 = arith.addf %26, %33 : vector<8x128xf32>
    %35 = vector.extract_strided_slice %0 {offsets = [0, 4], sizes = [8, 1], strides = [1, 1]} : vector<8x8xi32> to vector<8x1xi32>
    %c64_i32 = arith.constant 64 : i32
    %36 = vector.broadcast %c64_i32 : i32 to vector<8x1xi32>
    %37 = arith.addi %35, %36 : vector<8x1xi32>
    %38 = vector.broadcast %37 : vector<8x1xi32> to vector<8x128xi32>
    %39 = arith.cmpi eq, %38, %1 : vector<8x128xi32>
    %40 = arith.extui %39 : vector<8x128xi1> to vector<8x128xi32>
    %41 = arith.sitofp %40 : vector<8x128xi32> to vector<8x128xf32>
    %42 = arith.addf %34, %41 : vector<8x128xf32>
    %43 = vector.extract_strided_slice %0 {offsets = [0, 5], sizes = [8, 1], strides = [1, 1]} : vector<8x8xi32> to vector<8x1xi32>
    %c64_i32_3 = arith.constant 64 : i32
    %44 = vector.broadcast %c64_i32_3 : i32 to vector<8x1xi32>
    %45 = arith.addi %43, %44 : vector<8x1xi32>
    %46 = vector.broadcast %45 : vector<8x1xi32> to vector<8x128xi32>
    %47 = arith.cmpi eq, %46, %1 : vector<8x128xi32>
    %48 = arith.extui %47 : vector<8x128xi1> to vector<8x128xi32>
    %49 = arith.sitofp %48 : vector<8x128xi32> to vector<8x128xf32>
    %50 = arith.addf %42, %49 : vector<8x128xf32>
    %51 = vector.extract_strided_slice %0 {offsets = [0, 6], sizes = [8, 1], strides = [1, 1]} : vector<8x8xi32> to vector<8x1xi32>
    %c96_i32 = arith.constant 96 : i32
    %52 = vector.broadcast %c96_i32 : i32 to vector<8x1xi32>
    %53 = arith.addi %51, %52 : vector<8x1xi32>
    %54 = vector.broadcast %53 : vector<8x1xi32> to vector<8x128xi32>
    %55 = arith.cmpi eq, %54, %1 : vector<8x128xi32>
    %56 = arith.extui %55 : vector<8x128xi1> to vector<8x128xi32>
    %57 = arith.sitofp %56 : vector<8x128xi32> to vector<8x128xf32>
    %58 = arith.addf %50, %57 : vector<8x128xf32>
    %59 = vector.extract_strided_slice %0 {offsets = [0, 7], sizes = [8, 1], strides = [1, 1]} : vector<8x8xi32> to vector<8x1xi32>
    %c96_i32_4 = arith.constant 96 : i32
    %60 = vector.broadcast %c96_i32_4 : i32 to vector<8x1xi32>
    %61 = arith.addi %59, %60 : vector<8x1xi32>
    %62 = vector.broadcast %61 : vector<8x1xi32> to vector<8x128xi32>
    %63 = arith.cmpi eq, %62, %1 : vector<8x128xi32>
    %64 = arith.extui %63 : vector<8x128xi1> to vector<8x128xi32>
    %65 = arith.sitofp %64 : vector<8x128xi32> to vector<8x128xf32>
    %66 = arith.addf %58, %65 : vector<8x128xf32>
    %c0_5 = arith.constant 0 : index
    %c0_6 = arith.constant 0 : index
    %67 = vector.load %arg3[%c0_5, %c0_6] : memref<128x128xf32, #tpu.memory_space<vmem>>, vector<128x128xf32>
    %cst_7 = arith.constant dense<0.000000e+00> : vector<8x128xf32>
    %68 = tpu.matmul %66, %67, %cst_7 {dimension_numbers = #tpu.dot_dimension_numbers<[1], [0], [0], [1], [0, 0, 1, 1], [], []>} : vector<8x128xf32>, vector<128x128xf32>, vector<8x128xf32> -> vector<8x128xf32>
    %c0_8 = arith.constant 0 : index
    %c0_9 = arith.constant 0 : index
    %69 = vector.load %arg1[%c0_8, %c0_9] : memref<8x64xf32, #tpu.memory_space<vmem>>, vector<8x64xf32>
    %c0_10 = arith.constant 0 : index
    %c0_11 = arith.constant 0 : index
    %70 = vector.load %arg4[%c0_10, %c0_11] : memref<64x128xf32, #tpu.memory_space<vmem>>, vector<64x128xf32>
    %cst_12 = arith.constant dense<0.000000e+00> : vector<8x128xf32>
    %71 = tpu.matmul %69, %70, %cst_12 {dimension_numbers = #tpu.dot_dimension_numbers<[1], [0], [0], [1], [0, 0, 1, 1], [], []>} : vector<8x64xf32>, vector<64x128xf32>, vector<8x128xf32> -> vector<8x128xf32>
    %72 = arith.addf %68, %71 : vector<8x128xf32>
    %c0_13 = arith.constant 0 : index
    %c0_14 = arith.constant 0 : index
    %73 = vector.load %arg5[%c0_13, %c0_14] : memref<1x128xf32, #tpu.memory_space<vmem>>, vector<1x128xf32>
    %74 = vector.broadcast %73 : vector<1x128xf32> to vector<8x128xf32>
    %75 = arith.addf %72, %74 : vector<8x128xf32>
    %c0_15 = arith.constant 0 : index
    %c0_16 = arith.constant 0 : index
    %76 = vector.load %arg6[%c0_15, %c0_16] : memref<8x128xf32, #tpu.memory_space<vmem>>, vector<8x128xf32>
    tpu.vector_store %arg6[%c0_15, %c0_16], %75 {strides = array<i32>} : memref<8x128xf32, #tpu.memory_space<vmem>>, vector<8x128xf32>,
    return
  }
  func.func @transform_0(%arg0: i32) -> (i32, i32) {
    %c0_i32 = arith.constant 0 : i32
    %c0_i32_0 = arith.constant 0 : i32
    return %arg0, %c0_i32 : i32, i32
  }
  func.func @transform_1(%arg0: i32) -> (i32, i32) {
    %c0_i32 = arith.constant 0 : i32
    %c0_i32_0 = arith.constant 0 : i32
    return %arg0, %c0_i32 : i32, i32
  }
  func.func @transform_2(%arg0: i32) -> (i32, i32) {
    %c0_i32 = arith.constant 0 : i32
    %c0_i32_0 = arith.constant 0 : i32
    %c0_i32_1 = arith.constant 0 : i32
    return %c0_i32, %c0_i32_0 : i32, i32
  }
  func.func @transform_3(%arg0: i32) -> (i32, i32) {
    %c0_i32 = arith.constant 0 : i32
    %c0_i32_0 = arith.constant 0 : i32
    %c0_i32_1 = arith.constant 0 : i32
    return %c0_i32, %c0_i32_0 : i32, i32
  }
  func.func @transform_4(%arg0: i32) -> (i32, i32) {
    %c0_i32 = arith.constant 0 : i32
    %c0_i32_0 = arith.constant 0 : i32
    %c0_i32_1 = arith.constant 0 : i32
    return %c0_i32, %c0_i32_0 : i32, i32
  }
  func.func @transform_5(%arg0: i32) -> (i32, i32) {
    %c0_i32 = arith.constant 0 : i32
    %c0_i32_0 = arith.constant 0 : i32
    return %arg0, %c0_i32 : i32, i32
  }
}

</mosaic_0001>

<llo_original>
// kernel: tpu_custom_call.1
$region0: #{tpu_custom_call.1}
  #allocation0 [shape = 'u32[]', space=smem, size = 0x4, offset = 0x4, fixed_abs, tag = 'smem constant byte address 0x4 - core index']
  #allocation1 [shape = 'u32[144,128]{1,0:T(1,128)}', space=vmem, size = 0x12000, scoped, tag = 'internal scratch']
  %s0 = inlined_call_operand.hbm [shape: f32[8,64], index: 0, kind: input, shape index: {}]
  %s1 = inlined_call_operand.hbm [shape: s32[8,8], index: 1, kind: input, shape index: {}]
  %s2 = inlined_call_operand.hbm [shape: f32[128,128], index: 2, kind: input, shape index: {}]
  %s3 = inlined_call_operand.hbm [shape: f32[64,128], index: 3, kind: input, shape index: {}]
  %s4 = inlined_call_operand.vmem [shape: f32[1,128], index: 4, kind: input, shape index: {}]
  %s5 = inlined_call_operand.hbm [shape: f32[8,128], index: 5, kind: output, shape index: {}]
  %s6 = sld [smem:[#allocation0]]
  $region46: #{tpu_custom_call.1} parent=0
    _
  %s8 = ssub.s32 1, %s6
  %s9 = scalar_select 0, %s8, %s6
  $region1: #{tpu_custom_call.1} parent=0
    #allocation2 [shape = 'u8[4096]{0}', space=vmem, size = 0x1000, scoped, tag = 'input window, operand 0, single buffered']
    #allocation3 [shape = 's32[1]{0}', space=sflag, size = 0x4, scoped, tag = 'scoped memory for tpu_custom_call.1']
    #allocation4 [shape = 's32[1]{0}', space=sflag, size = 0x4, scoped, tag = 'scoped memory for tpu_custom_call.1']
    #allocation5 [shape = 'u8[4096]{0}', space=vmem, size = 0x1000, scoped, tag = 'input window, operand 1, single buffered']
    #allocation6 [shape = 's32[1]{0}', space=sflag, size = 0x4, scoped, tag = 'scoped memory for tpu_custom_call.1']
    #allocation7 [shape = 'u8[65536]{0}', space=vmem, size = 0x10000, scoped, tag = 'input window, operand 2, single buffered']
    #allocation8 [shape = 'u8[32768]{0}', space=vmem, size = 0x8000, scoped, tag = 'input window, operand 3, single buffered']
    #allocation9 [shape = 's32[1]{0}', space=sflag, size = 0x4, scoped, tag = 'scoped memory for tpu_custom_call.1']
    #allocation10 [shape = 'u8[4096]{0}', space=vmem, size = 0x1000, scoped, tag = 'output window, operand 0, single buffered']
    %10 = vsyncpa [#allocation3], 0
    %11 = vsyncpa [#allocation6], 0
    %12 = vsyncpa [#allocation9], 0
    %13 = vsyncpa [#allocation4], 0
    // Predicated region
    $region2: #{tpu_custom_call.1} parent=1 // pred_check
      _
    $region3: #{tpu_custom_call.1} parent=1 // pred_check_branch
      %15 = sbr.rel (0) target = $region5
    $region4: #{tpu_custom_call.1} parent=1 // pred_region
      %s17 = ssub.s32 128, 128
      %18 = vsyncadd [#allocation3], %s17
      %s20 = sshll.u32 [#allocation2], 4
      %s21 = int_to_ptr.vmem [resolvable:$true] %s20
      %23 = dma.hbm_to_vmem [thread:$0]  %s0, 128, %s21, [#allocation3]
    $region5: #{tpu_custom_call.1} parent=1 // pred_fallthru
      _
    // Predicated region
    $region6: #{tpu_custom_call.1} parent=1 // pred_check
      _
    $region7: #{tpu_custom_call.1} parent=1 // pred_check_branch
      %25 = sbr.rel (0) target = $region9
    $region8: #{tpu_custom_call.1} parent=1 // pred_region
      %s27 = ssub.s32 128, 128
      %28 = vsyncadd [#allocation6], %s27
      %s30 = sshll.u32 [#allocation5], 4
      %s31 = int_to_ptr.vmem [resolvable:$true] %s30
      %33 = dma.hbm_to_vmem [thread:$0]  %s1, 128, %s31, [#allocation6]
    $region9: #{tpu_custom_call.1} parent=1 // pred_fallthru
      _
    // Predicated region
    $region10: #{tpu_custom_call.1} parent=1 // pred_check
      _
    $region11: #{tpu_custom_call.1} parent=1 // pred_check_branch
      %35 = sbr.rel (0) target = $region13
    $region12: #{tpu_custom_call.1} parent=1 // pred_region
      %s37 = ssub.s32 2048, 2048
      %38 = vsyncadd [#allocation6], %s37
      %s39 = sshll.u32 [#allocation7], 4
      %s40 = int_to_ptr.vmem [resolvable:$true] %s39
      %45 = dma.hbm_to_vmem [thread:$0]  %s2, 2048, %s40, [#allocation6], 128, 128, 8
    $region13: #{tpu_custom_call.1} parent=1 // pred_fallthru
      _
    // Predicated region
    $region14: #{tpu_custom_call.1} parent=1 // pred_check
      _
    $region15: #{tpu_custom_call.1} parent=1 // pred_check_branch
      %47 = sbr.rel (0) target = $region17
    $region16: #{tpu_custom_call.1} parent=1 // pred_region
      %s49 = ssub.s32 1024, 1024
      %50 = vsyncadd [#allocation9], %s49
      %s51 = sshll.u32 [#allocation8], 4
      %s52 = int_to_ptr.vmem [resolvable:$true] %s51
      %57 = dma.hbm_to_vmem [thread:$0]  %s3, 1024, %s52, [#allocation9], 128, 128, 8
    $region17: #{tpu_custom_call.1} parent=1 // pred_fallthru
      _
    // Predicated region
    $region18: #{tpu_custom_call.1} parent=1 // pred_check
      _
    $region19: #{tpu_custom_call.1} parent=1 // pred_check_branch
      %59 = sbr.rel (0) target = $region21
    $region20: #{tpu_custom_call.1} parent=1 // pred_region
      _
    $region21: #{tpu_custom_call.1} parent=1 // pred_fallthru
      _
    // Predicated region
    $region22: #{tpu_custom_call.1} parent=1 // pred_check
      _
    $region23: #{tpu_custom_call.1} parent=1 // pred_check_branch
      %61 = sbr.rel (0) target = $region25
    $region24: #{tpu_custom_call.1} parent=1 // pred_region
      %62 = dma.done [#allocation3], 128
    $region25: #{tpu_custom_call.1} parent=1 // pred_fallthru
      _
    // Predicated region
    $region26: #{tpu_custom_call.1} parent=1 // pred_check
      _
    $region27: #{tpu_custom_call.1} parent=1 // pred_check_branch
      %64 = sbr.rel (0) target = $region29
    $region28: #{tpu_custom_call.1} parent=1 // pred_region
      %65 = dma.done [#allocation6], 128
    $region29: #{tpu_custom_call.1} parent=1 // pred_fallthru
      _
    // Predicated region
    $region30: #{tpu_custom_call.1} parent=1 // pred_check
      _
    $region31: #{tpu_custom_call.1} parent=1 // pred_check_branch
      %67 = sbr.rel (0) target = $region33
    $region32: #{tpu_custom_call.1} parent=1 // pred_region
      %68 = dma.done [#allocation6], 2048
    $region33: #{tpu_custom_call.1} parent=1 // pred_fallthru
      _
    // Predicated region
    $region34: #{tpu_custom_call.1} parent=1 // pred_check
      _
    $region35: #{tpu_custom_call.1} parent=1 // pred_check_branch
      %70 = sbr.rel (0) target = $region37
    $region36: #{tpu_custom_call.1} parent=1 // pred_region
      %71 = dma.done [#allocation9], 1024
    $region37: #{tpu_custom_call.1} parent=1 // pred_fallthru
      _
    %v72 = vld [vmem:[#allocation5] sm:$0xff]
    %v73 = vlaneseq
    %v74 = vand.u32 %v73, 127
    %75 = vset.pattern.permute.xlu0 0
    %76 = vperm.xlu0 %75, %v72
    %v77 = vpop.permute.xlu0 %76
    %vm78 = vcmp.eq.s32.totalorder %v77, %v74
    %v79 = vsel %vm78, 1, 0
    %v80 = vcvt.s32.f32 %v79
    %v81 = vadd.f32 %v80, 0.0
    %82 = vset.pattern.permute.xlu0 1
    %83 = vperm.xlu0 %82, %v72
    %v84 = vpop.permute.xlu0 %83
    %vm85 = vcmp.eq.s32.totalorder %v84, %v74
    %v86 = vsel %vm85, 1, 0
    %v87 = vcvt.s32.f32 %v86
    %v88 = vadd.f32 %v81, %v87
    %v89 = vadd.s32 %v72, 32
    %90 = vset.pattern.permute.xlu0 2
    %91 = vperm.xlu0 %90, %v89
    %v92 = vpop.permute.xlu0 %91
    %vm93 = vcmp.eq.s32.totalorder %v92, %v74
    %v94 = vsel %vm93, 1, 0
    %v95 = vcvt.s32.f32 %v94
    %v96 = vadd.f32 %v88, %v95
    %97 = vset.pattern.permute.xlu0 3
    %98 = vperm.xlu0 %97, %v89
    %v99 = vpop.permute.xlu0 %98
    %vm100 = vcmp.eq.s32.totalorder %v99, %v74
    %v101 = vsel %vm100, 1, 0
    %v102 = vcvt.s32.f32 %v101
    %v103 = vadd.f32 %v96, %v102
    %v104 = vadd.s32 %v72, 64
    %105 = vset.pattern.permute.xlu0 4
    %106 = vperm.xlu0 %105, %v104
    %v107 = vpop.permute.xlu0 %106
    %vm108 = vcmp.eq.s32.totalorder %v107, %v74
    %v109 = vsel %vm108, 1, 0
    %v110 = vcvt.s32.f32 %v109
    %v111 = vadd.f32 %v103, %v110
    %112 = vset.pattern.permute.xlu0 5
    %113 = vperm.xlu0 %112, %v104
    %v114 = vpop.permute.xlu0 %113
    %vm115 = vcmp.eq.s32.totalorder %v114, %v74
    %v116 = vsel %vm115, 1, 0
    %v117 = vcvt.s32.f32 %v116
    %v118 = vadd.f32 %v111, %v117
    %v119 = vadd.s32 %v72, 96
    %120 = vset.pattern.permute.xlu0 6
    %121 = vperm.xlu0 %120, %v119
    %v122 = vpop.permute.xlu0 %121
    %vm123 = vcmp.eq.s32.totalorder %v122, %v74
    %v124 = vsel %vm123, 1, 0
    %v125 = vcvt.s32.f32 %v124
    %v126 = vadd.f32 %v118, %v125
    %127 = vset.pattern.permute.xlu0 7
    %128 = vperm.xlu0 %127, %v119
    %v129 = vpop.permute.xlu0 %128
    %vm130 = vcmp.eq.s32.totalorder %v129, %v74
    %v131 = vsel %vm130, 1, 0
    %v132 = vcvt.s32.f32 %v131
    %v133 = vadd.f32 %v126, %v132
    %v134 = vld [vmem:[#allocation7] sm:$0xff]
    %v135 = vld [vmem:[#allocation7 + $0x8] sm:$0xff]
    %v136 = vld [vmem:[#allocation7 + $0x10] sm:$0xff]
    %v137 = vld [vmem:[#allocation7 + $0x18] sm:$0xff]
    %v138 = vld [vmem:[#allocation7 + $0x20] sm:$0xff]
    %v139 = vld [vmem:[#allocation7 + $0x28] sm:$0xff]
    %v140 = vld [vmem:[#allocation7 + $0x30] sm:$0xff]
    %v141 = vld [vmem:[#allocation7 + $0x38] sm:$0xff]
    %v142 = vld [vmem:[#allocation7 + $0x40] sm:$0xff]
    %v143 = vld [vmem:[#allocation7 + $0x48] sm:$0xff]
    %v144 = vld [vmem:[#allocation7 + $0x50] sm:$0xff]
    %v145 = vld [vmem:[#allocation7 + $0x58] sm:$0xff]
    %v146 = vld [vmem:[#allocation7 + $0x60] sm:$0xff]
    %v147 = vld [vmem:[#allocation7 + $0x68] sm:$0xff]
    %v148 = vld [vmem:[#allocation7 + $0x70] sm:$0xff]
    %v149 = vld [vmem:[#allocation7 + $0x78] sm:$0xff]
    %v150 = vld [vmem:[#allocation2] sm:$0xff]
    %v151 = vld [vmem:[#allocation8] sm:$0xff]
    %v152 = vld [vmem:[#allocation8 + $0x8] sm:$0xff]
    %v153 = vld [vmem:[#allocation8 + $0x10] sm:$0xff]
    %v154 = vld [vmem:[#allocation8 + $0x18] sm:$0xff]
    %v155 = vld [vmem:[#allocation8 + $0x20] sm:$0xff]
    %v156 = vld [vmem:[#allocation8 + $0x28] sm:$0xff]
    %v157 = vld [vmem:[#allocation8 + $0x30] sm:$0xff]
    %v158 = vld [vmem:[#allocation8 + $0x38] sm:$0xff]
    %vm159 = vcmask 523264
    %v161 = vsel %vm159, %v150, 0
    %163 = vmatprep.subr.mxu0 0.0
    %164 = vmatpush1.msra.mxu0 %v151
    %165 = vmatprep.subr.mxu0 0.0
    %166 = vmatpush1.msra.mxu0 %v152
    %167 = vmatprep.subr.mxu0 0.0
    %168 = vmatpush1.msra.mxu0 %v153
    %169 = vmatprep.subr.mxu0 0.0
    %170 = vmatpush1.msra.mxu0 %v154
    %171 = vmatprep.subr.mxu0 0.0
    %172 = vmatpush1.msra.mxu0 %v155
    %173 = vmatprep.subr.mxu0 0.0
    %174 = vmatpush1.msra.mxu0 %v156
    %175 = vmatprep.subr.mxu0 0.0
    %176 = vmatpush1.msra.mxu0 %v157
    %177 = vmatprep.subr.mxu0 0.0
    %178 = vmatpush1.msra.mxu0 %v158
    %179 = vmatprep.subr.mxu0 0.0
    %180 = vmatpush1.msra.mxu0 0.0
    %181 = vmatprep.subr.mxu0 0.0
    %182 = vmatpush1.msra.mxu0 0.0
    %183 = vmatprep.subr.mxu0 0.0
    %184 = vmatpush1.msra.mxu0 0.0
    %185 = vmatprep.subr.mxu0 0.0
    %186 = vmatpush1.msra.mxu0 0.0
    %187 = vmatprep.subr.mxu0 0.0
    %188 = vmatpush1.msra.mxu0 0.0
    %189 = vmatprep.subr.mxu0 0.0
    %190 = vmatpush1.msra.mxu0 0.0
    %191 = vmatprep.subr.mxu0 0.0
    %192 = vmatpush1.msra.mxu0 0.0
    %193 = vmatprep.subr.mxu0 0.0
    %194 = vmatpush1.msra.mxu0 0.0
    %195 = vmatprep.subr.mxu0 0.0
    %196 = vmatpush1.msra.mxu0 0.0
    %197 = vmatprep.subr.mxu0 0.0
    %198 = vmatpush1.msra.mxu0 0.0
    %199 = vmatprep.subr.mxu0 0.0
    %200 = vmatpush1.msra.mxu0 0.0
    %201 = vmatprep.subr.mxu0 0.0
    %202 = vmatpush1.msra.mxu0 0.0
    %203 = vmatprep.subr.mxu0 0.0
    %204 = vmatpush1.msra.mxu0 0.0
    %205 = vmatprep.subr.mxu0 0.0
    %206 = vmatpush1.msra.mxu0 0.0
    %207 = vmatprep.subr.mxu0 0.0
    %208 = vmatpush1.msra.mxu0 0.0
    %209 = vmatprep.subr.mxu0 0.0
    %210 = vmatpush1.msra.mxu0 0.0
    %211 = vmatprep.subr.mxu0 0.0
    %212 = vmatpush1.msra.mxu0 0.0
    %213 = vmatprep.subr.mxu0 0.0
    %214 = vmatpush1.msra.mxu0 0.0
    %215 = vmatprep.subr.mxu0 0.0
    %216 = vmatpush1.msra.mxu0 0.0
    %217 = vmatprep.subr.mxu0 0.0
    %218 = vmatpush1.msra.mxu0 0.0
    %219 = vmatprep.subr.mxu0 0.0
    %220 = vmatpush1.msra.mxu0 0.0
    %221 = vmatprep.subr.mxu0 0.0
    %222 = vmatpush1.msra.mxu0 0.0
    %223 = vmatprep.subr.mxu0 0.0
    %224 = vmatpush1.msra.mxu0 0.0
    %225 = vmatprep.subr.mxu0 0.0
    %226 = vmatpush1.msra.mxu0 0.0
    %227 = vmatprep.mubr.f32.mxu0 0.0
    %228 = vmatmul.mubr.f32.gmra.mrb[0].mxu0 %v161
    %v229 = vpop.f32.mrb[0].mxu0
    %v230 = vadd.f32 0.0, %v229
    %v231 = vpop.f32.mrb[0].mxu0
    %232 = vdwg.mxu0
    %233 = vmatprep.subr.mxu0 0.0
    %234 = vmatpush1.msra.mxu0 %v134
    %235 = vmatprep.subr.mxu0 0.0
    %236 = vmatpush1.msra.mxu0 %v135
    %237 = vmatprep.subr.mxu0 0.0
    %238 = vmatpush1.msra.mxu0 %v136
    %239 = vmatprep.subr.mxu0 0.0
    %240 = vmatpush1.msra.mxu0 %v137
    %241 = vmatprep.subr.mxu0 0.0
    %242 = vmatpush1.msra.mxu0 %v138
    %243 = vmatprep.subr.mxu0 0.0
    %244 = vmatpush1.msra.mxu0 %v139
    %245 = vmatprep.subr.mxu0 0.0
    %246 = vmatpush1.msra.mxu0 %v140
    %247 = vmatprep.subr.mxu0 0.0
    %248 = vmatpush1.msra.mxu0 %v141
    %249 = vmatprep.subr.mxu0 0.0
    %250 = vmatpush1.msra.mxu0 %v142
    %251 = vmatprep.subr.mxu0 0.0
    %252 = vmatpush1.msra.mxu0 %v143
    %253 = vmatprep.subr.mxu0 0.0
    %254 = vmatpush1.msra.mxu0 %v144
    %255 = vmatprep.subr.mxu0 0.0
    %256 = vmatpush1.msra.mxu0 %v145
    %257 = vmatprep.subr.mxu0 0.0
    %258 = vmatpush1.msra.mxu0 %v146
    %259 = vmatprep.subr.mxu0 0.0
    %260 = vmatpush1.msra.mxu0 %v147
    %261 = vmatprep.subr.mxu0 0.0
    %262 = vmatpush1.msra.mxu0 %v148
    %263 = vmatprep.subr.mxu0 0.0
    %264 = vmatpush1.msra.mxu0 %v149
    %265 = vmatprep.subr.mxu0 0.0
    %266 = vmatpush1.msra.mxu0 0.0
    %267 = vmatprep.subr.mxu0 0.0
    %268 = vmatpush1.msra.mxu0 0.0
    %269 = vmatprep.subr.mxu0 0.0
    %270 = vmatpush1.msra.mxu0 0.0
    %271 = vmatprep.subr.mxu0 0.0
    %272 = vmatpush1.msra.mxu0 0.0
    %273 = vmatprep.subr.mxu0 0.0
    %274 = vmatpush1.msra.mxu0 0.0
    %275 = vmatprep.subr.mxu0 0.0
    %276 = vmatpush1.msra.mxu0 0.0
    %277 = vmatprep.subr.mxu0 0.0
    %278 = vmatpush1.msra.mxu0 0.0
    %279 = vmatprep.subr.mxu0 0.0
    %280 = vmatpush1.msra.mxu0 0.0
    %281 = vmatprep.subr.mxu0 0.0
    %282 = vmatpush1.msra.mxu0 0.0
    %283 = vmatprep.subr.mxu0 0.0
    %284 = vmatpush1.msra.mxu0 0.0
    %285 = vmatprep.subr.mxu0 0.0
    %286 = vmatpush1.msra.mxu0 0.0
    %287 = vmatprep.subr.mxu0 0.0
    %288 = vmatpush1.msra.mxu0 0.0
    %289 = vmatprep.subr.mxu0 0.0
    %290 = vmatpush1.msra.mxu0 0.0
    %291 = vmatprep.subr.mxu0 0.0
    %292 = vmatpush1.msra.mxu0 0.0
    %293 = vmatprep.subr.mxu0 0.0
    %294 = vmatpush1.msra.mxu0 0.0
    %295 = vmatprep.subr.mxu0 0.0
    %296 = vmatpush1.msra.mxu0 0.0
    %297 = vmatprep.mubr.f32.mxu0 0.0
    %298 = vmatmul.mubr.f32.gmra.mrb[0].mxu0 %v133
    %v299 = vpop.f32.mrb[0].mxu0
    %v300 = vadd.f32 %v230, %v299
    %v301 = vpop.f32.mrb[0].mxu0
    %302 = vdwg.mxu0
    %v303 = vld [vmem:[%s4] sm:$0x1]
    %v305 = vlaneseq
    %v306 = vshrl.u32 %v305, 7
    %v307 = vsub.s32 0, %v306
    %v308 = vrot.slane %v303, %v307
    %v310 = vadd.f32 %v300, %v308
    %311 = vst [vmem:[#allocation10] sm:$0xff] %v310
    // Predicated region
    $region38: #{tpu_custom_call.1} parent=1 // pred_check
      _
    $region39: #{tpu_custom_call.1} parent=1 // pred_check_branch
      %313 = sbr.rel (0) target = $region41
    $region40: #{tpu_custom_call.1} parent=1 // pred_region
      %s315 = ssub.s32 128, 128
      %316 = vsyncadd [#allocation4], %s315
      %s318 = sshll.u32 [#allocation10], 4
      %s319 = int_to_ptr.vmem [resolvable:$true] %s318
      %321 = dma.vmem_to_hbm [thread:$0]  %s319, 128, %s5, [#allocation4]
    $region41: #{tpu_custom_call.1} parent=1 // pred_fallthru
      _
    // Predicated region
    $region42: #{tpu_custom_call.1} parent=1 // pred_check
      _
    $region43: #{tpu_custom_call.1} parent=1 // pred_check_branch
      %323 = sbr.rel (0) target = $region45
    $region44: #{tpu_custom_call.1} parent=1 // pred_region
      %324 = dma.done [#allocation4], 128
    $region45: #{tpu_custom_call.1} parent=1 // pred_fallthru
      _
    %325 = vsyncpa [#allocation3], 1
    %326 = vsyncpa [#allocation6], 1
    %327 = vsyncpa [#allocation9], 1
    %328 = vsyncpa [#allocation4], 1

</llo_original>
